<compile_context>
chip_gen: v7x
topology: tpu7x:2x2x1
jax: 0.10.0
libtpu: 0.0.40
codegen_flags: <defaults>
</compile_context>

<pallas_src>
import functools

import jax
import jax.numpy as jnp
from jax.experimental import pallas as pl
from jax.experimental.pallas import tpu as pltpu


def _round_up(x, m):
    return (x + m - 1) // m * m


# Per-buffer budget for pinning XW resident in VMEM (double-buffered by the
# pipeline => ~2x this at peak).  Conservative enough for v7x (64 MiB VMEM).
_XW_RESIDENT_BYTES = 8 * 1024 * 1024


# ----------------------------- Pallas kernel ------------------------------- #

def _gcn_agg_kernel(a_ref, xw_ref, b_ref, o_ref, acc_ref, *,
                    apply_relu, tk, resident):
    """out_rows = [relu]( sum_k A[i,k] @ XW[k] + b ) for one row tile i."""
    k = pl.program_id(1)

    @pl.when(k == 0)
    def _():
        # Fold the bias into the accumulator init (saves an epilogue VPU add).
        acc_ref[...] = jnp.broadcast_to(b_ref[...].astype(jnp.float32),
                                        acc_ref.shape)

    if resident:
        # XW is one VMEM-resident block; slice the k-th (tk, F_out) chunk.
        off = pl.multiple_of(k * tk, tk)
        xw_blk = xw_ref[pl.ds(off, tk), :]
    else:
        xw_blk = xw_ref[...]

    # (TM, TK) bf16 @ (TK, F_out) bf16 -> f32 accumulate on the MXU.
    acc_ref[...] += jnp.dot(a_ref[...], xw_blk,
                            preferred_element_type=jnp.float32)

    @pl.when(k == pl.num_programs(1) - 1)
    def _():
        h = acc_ref[...]
        if apply_relu:
            h = jnp.maximum(h, 0.0)
        o_ref[...] = h.astype(o_ref.dtype)


def _choose_tiles(n):
    """Pick (n_pad, tm, tk).

    DMA-bound on dense A, so: biggest streamed blocks that (a) keep >= 2 row
    tiles when the graph allows (v7x has 2 TensorCores on the 'parallel' axis)
    and (b) stay far inside every generation's VMEM (v7x: 64 MiB physical).
    N is padded to the tile LCM so the big-tile path always fires.
    """
    if n <= 256:
        n_pad = max(_round_up(n, 128), 128)
        tm, tk = 128, n_pad
    elif n <= 2048:
        n_pad = _round_up(n, 512)
        tm, tk = 256, 512
    else:
        n_pad = _round_up(n, 1024)
        tm, tk = 512, 1024
    return n_pad, tm, tk


def gcn_agg_layer(a_pad, xw_pad, b_pad, *, apply_relu, out_dtype, tm, tk):
    """out = [relu](a_pad @ xw_pad + b_pad).  Operands already padded/aligned."""
    n_pad = a_pad.shape[0]
    f_out = xw_pad.shape[1]
    grid = (n_pad // tm, n_pad // tk)

    resident = xw_pad.size * xw_pad.dtype.itemsize <= _XW_RESIDENT_BYTES
    if resident:
        # Constant index map => DMA'd into VMEM once, reused by every grid step.
        xw_spec = pl.BlockSpec((n_pad, f_out), lambda i, k: (0, 0))
        xw_bytes = xw_pad.size * xw_pad.dtype.itemsize
    else:
        # Fallback for graphs too large to pin: stream (tk, f_out) per k step
        # (re-read once per row tile).
        xw_spec = pl.BlockSpec((tk, f_out), lambda i, k: (k, 0))
        xw_bytes = grid[0] * xw_pad.size * xw_pad.dtype.itemsize

    cost = pl.CostEstimate(
        flops=2 * n_pad * n_pad * f_out,
        transcendentals=0,
        bytes_accessed=(a_pad.size * a_pad.dtype.itemsize
                        + xw_bytes
                        + b_pad.size * b_pad.dtype.itemsize
                        + n_pad * f_out * jnp.dtype(out_dtype).itemsize),
    )

    kernel = functools.partial(_gcn_agg_kernel, apply_relu=apply_relu,
                               tk=tk, resident=resident)
    return pl.pallas_call(
        kernel,
        out_shape=jax.ShapeDtypeStruct((n_pad, f_out), out_dtype),
        grid_spec=pltpu.PrefetchScalarGridSpec(
            num_scalar_prefetch=0,
            grid=grid,
            in_specs=[
                pl.BlockSpec((tm, tk), lambda i, k: (i, k)),   # A tile (streamed)
                xw_spec,                                        # XW (resident/streamed)
                pl.BlockSpec((1, f_out), lambda i, k: (0, 0)),  # bias (resident)
            ],
            out_specs=pl.BlockSpec((tm, f_out), lambda i, k: (i, 0)),
            scratch_shapes=[pltpu.VMEM((tm, f_out), jnp.float32)],
        ),
        compiler_params=pltpu.CompilerParams(
            dimension_semantics=("parallel", "arbitrary"),
            vmem_limit_bytes=48 * 1024 * 1024,
        ),
        cost_estimate=cost,
    )(a_pad, xw_pad, b_pad)


# ------------------------------- plain-JAX glue ----------------------------- #

def precompute_norm_adj(edge_index, num_nodes, n_pad):
    """Dense D^-1/2 (A + remaining self loops) D^-1/2 (PyG gcn_norm), built
    directly at the padded shape and cast once to bf16.  For a static graph,
    call this once outside jit and reuse across forwards."""
    src = edge_index[0]
    dst = edge_index[1]
    a = jnp.zeros((n_pad, n_pad), jnp.float32)
    a = a.at[dst, src].add(1.0)                   # edge j -> i lands in row i
    # add_remaining_self_loops: weight-1 self loop only where none exists,
    # and only for real nodes (padding rows stay all-zero).
    idx = jnp.arange(num_nodes)
    diag = a[idx, idx]
    a = a.at[idx, idx].add(jnp.where(diag > 0.0, 0.0, 1.0))
    deg = a.sum(axis=1)
    dinv_sqrt = jnp.where(deg > 0, jax.lax.rsqrt(deg), 0.0)
    return (dinv_sqrt[:, None] * a * dinv_sqrt[None, :]).astype(jnp.bfloat16)


def _pad2(x, rows, cols):
    return jnp.pad(x, ((0, rows - x.shape[0]), (0, cols - x.shape[1])))


def _fold_bn(w, b, bn, eps=1e-5):
    """Fold eval-mode BatchNorm1d into the conv weight/bias."""
    scale = bn["gamma"] * jax.lax.rsqrt(bn["var"] + eps)     # (1, F_out)
    return w * scale, (b - bn["mean"]) * scale + bn["beta"]


def glorot(key, shape):
    fan_in, fan_out = shape
    limit = jnp.sqrt(6.0 / (fan_in + fan_out))
    return jax.random.uniform(key, shape, jnp.float32, -limit, limit)


def init_gcn_params(key, in_feats, h_feats, num_layers=2):
    dims = [in_feats] + [h_feats] * num_layers
    keys = jax.random.split(key, num_layers)
    convs = []
    for li in range(num_layers):
        convs.append({"w": glorot(keys[li], (dims[li], dims[li + 1])),
                      "b": jnp.zeros((1, dims[li + 1]), jnp.float32)})
    bns = []
    for _ in range(num_layers - 1):
        bns.append({"gamma": jnp.ones((1, h_feats), jnp.float32),
                    "beta": jnp.zeros((1, h_feats), jnp.float32),
                    "mean": jnp.zeros((1, h_feats), jnp.float32),
                    "var": jnp.ones((1, h_feats), jnp.float32)})
    return {"convs": convs, "bns": bns}


def _premultiply(h_pad, w, b, n_pad):
    """XW = H @ W' (small matmul, outside the kernel), padded + bf16 for MXU."""
    f_out = w.shape[1]
    f_out_pad = _round_up(f_out, 128)
    xw = jnp.dot(h_pad.astype(jnp.float32), w,
                 preferred_element_type=jnp.float32)          # (n_pad, f_out)
    xw_pad = _pad2(xw, n_pad, f_out_pad).astype(jnp.bfloat16)
    b_pad = _pad2(b.astype(jnp.float32), 1, f_out_pad)
    return xw_pad, b_pad


def gcn_forward(params, x, edge_index):
    n, f_in = x.shape
    n_pad, tm, tk = _choose_tiles(n)

    # Adjacency built once per forward (hoistable for static graphs), bf16,
    # reused by every layer.
    a_pad = precompute_norm_adj(edge_index, n, n_pad)

    convs = params["convs"]
    bns = params["bns"]
    h_feats = convs[-1]["w"].shape[1]

    # Node features, rows padded to n_pad (padded rows/cols are zero, and the
    # corresponding columns of A are zero, so they never contaminate results).
    h = _pad2(x.astype(jnp.float32), n_pad, f_in)

    for i in range(len(convs) - 1):
        w, b = _fold_bn(convs[i]["w"], convs[i]["b"], bns[i])
        # h carries padded feature columns after layer 0; pad w's rows to match
        # (zero rows annihilate the padded columns).
        w_use = _pad2(w, h.shape[1], w.shape[1]) if h.shape[1] != w.shape[0] else w
        xw_pad, b_pad = _premultiply(h, w_use, b, n_pad)
        h = gcn_agg_layer(a_pad, xw_pad, b_pad, apply_relu=True,
                          out_dtype=jnp.bfloat16, tm=tm, tk=tk)
        # F.dropout: identity in eval mode.

    w, b = convs[-1]["w"], convs[-1]["b"]
    w_use = _pad2(w, h.shape[1], w.shape[1]) if h.shape[1] != w.shape[0] else w
    xw_pad, b_pad = _premultiply(h, w_use, b, n_pad)
    out = gcn_agg_layer(a_pad, xw_pad, b_pad, apply_relu=False,
                        out_dtype=jnp.float32, tm=tm, tk=tk)
    return out[:n, :h_feats]


# ----------------------------------- main ----------------------------------- #

if __name__ == "__main__":
    key = jax.random.PRNGKey(0)
    k_x, k_e, k_p = jax.random.split(key, 3)

    num_nodes = 16
    in_feats = 8
    h_feats = 32
    num_layers = 2
    num_edges = 40

    x = jax.random.normal(k_x, (num_nodes, in_feats), jnp.float32)
    edge_index = jax.random.randint(k_e, (2, num_edges), 0, num_nodes,
                                    dtype=jnp.int32)
    params = init_gcn_params(k_p, in_feats, h_feats, num_layers)

    fwd = jax.jit(gcn_forward)
    out = jax.block_until_ready(fwd(params, x, edge_index))

    assert out.shape == (num_nodes, h_feats)
    assert bool(jnp.all(jnp.isfinite(out)))
    print("KERNEL_OK")
</pallas_src>

<mosaic_0001>
module attributes {stable_mosaic.version = 11 : i64} {
  func.func private @main(%arg0: i32) attributes {dimension_semantics = [#tpu.dimension_semantics<core_parallel>], iteration_bounds = array<i64: 2>, tpu.core_type = #tpu.core_type<sc_scalar_subcore>, window_params = []} {
    return
  }
}

module attributes {stable_mosaic.version = 11 : i64} {
  func.func private @main(%arg0: i32) attributes {dimension_semantics = [#tpu.dimension_semantics<core_parallel>], iteration_bounds = array<i64: 2>, tpu.core_type = #tpu.core_type<sc_scalar_subcore>, window_params = []} {
    return
  }
}

module attributes {stable_mosaic.version = 11 : i64} {
  func.func @_gcn_agg_kernel(%arg0: i32, %arg1: i32, %arg2: memref<128x128xbf16, #tpu.memory_space<vmem>>, %arg3: memref<128x128xbf16, #tpu.memory_space<vmem>>, %arg4: memref<1x128xf32, #tpu.memory_space<vmem>>, %arg5: memref<128x128xbf16, #tpu.memory_space<vmem>>, %arg6: memref<128x128xf32, #tpu.memory_space<vmem>>) attributes {dimension_semantics = [#tpu.dimension_semantics<parallel>, #tpu.dimension_semantics<arbitrary>], iteration_bounds = array<i64: 1, 1>, scalar_prefetch = 0 : i64, scratch_operands = 1 : i64, tpu.core_type = #tpu.core_type<tc>, window_params = [{transform_indices = @transform_0, window_bounds = array<i64: 128, 128>}, {pipeline_mode = #tpu.pipeline_mode<synchronous>, transform_indices = @transform_1, window_bounds = array<i64: 128, 128>}, {pipeline_mode = #tpu.pipeline_mode<synchronous>, transform_indices = @transform_2, window_bounds = array<i64: 1, 128>}, {transform_indices = @transform_3, window_bounds = array<i64: 128, 128>}]} {
    %c0_i32 = arith.constant 0 : i32
    %0 = arith.cmpi eq, %arg1, %c0_i32 : i32
    %1 = arith.extui %0 : i1 to i32
    %c0_i32_0 = arith.constant 0 : i32
    %2 = arith.cmpi ne, %1, %c0_i32_0 : i32
    scf.if %2 {
      %c0_9 = arith.constant 0 : index
      %c0_10 = arith.constant 0 : index
      %15 = vector.load %arg4[%c0_9, %c0_10] : memref<1x128xf32, #tpu.memory_space<vmem>>, vector<1x128xf32>
      %16 = vector.shape_cast %15 : vector<1x128xf32> to vector<1x128xf32>
      %17 = vector.broadcast %16 : vector<1x128xf32> to vector<128x128xf32>
      %c0_11 = arith.constant 0 : index
      %c0_12 = arith.constant 0 : index
      %18 = vector.load %arg6[%c0_11, %c0_12] : memref<128x128xf32, #tpu.memory_space<vmem>>, vector<128x128xf32>
      tpu.vector_store %arg6[%c0_11, %c0_12], %17 {strides = array<i32>} : memref<128x128xf32, #tpu.memory_space<vmem>>, vector<128x128xf32>,
    } else {
    }
    %c128_i32 = arith.constant 128 : i32
    %3 = arith.muli %arg1, %c128_i32 : i32
    %4 = tpu.assume_multiple %3, 128 : i32
    %5 = arith.index_cast %4 : i32 to index
    %c0 = arith.constant 0 : index
    %6 = vector.load %arg3[%5, %c0] : memref<128x128xbf16, #tpu.memory_space<vmem>>, vector<128x128xbf16>
    %c0_1 = arith.constant 0 : index
    %c0_2 = arith.constant 0 : index
    %7 = vector.load %arg6[%c0_1, %c0_2] : memref<128x128xf32, #tpu.memory_space<vmem>>, vector<128x128xf32>
    %c0_3 = arith.constant 0 : index
    %c0_4 = arith.constant 0 : index
    %8 = vector.load %arg2[%c0_3, %c0_4] : memref<128x128xbf16, #tpu.memory_space<vmem>>, vector<128x128xbf16>
    %cst = arith.constant dense<0.000000e+00> : vector<128x128xf32>
    %9 = tpu.matmul %8, %6, %cst {dimension_numbers = #tpu.dot_dimension_numbers<[1], [0], [0], [1], [0, 0, 1, 1], [], []>} : vector<128x128xbf16>, vector<128x128xbf16>, vector<128x128xf32> -> vector<128x128xf32>
    %10 = arith.addf %7, %9 : vector<128x128xf32>
    %c0_5 = arith.constant 0 : index
    %c0_6 = arith.constant 0 : index
    %11 = vector.load %arg6[%c0_5, %c0_6] : memref<128x128xf32, #tpu.memory_space<vmem>>, vector<128x128xf32>
    tpu.vector_store %arg6[%c0_5, %c0_6], %10 {strides = array<i32>} : memref<128x128xf32, #tpu.memory_space<vmem>>, vector<128x128xf32>,
    %c0_i32_7 = arith.constant 0 : i32
    %12 = arith.cmpi eq, %arg1, %c0_i32_7 : i32
    %13 = arith.extui %12 : i1 to i32
    %c0_i32_8 = arith.constant 0 : i32
    %14 = arith.cmpi ne, %13, %c0_i32_8 : i32
    scf.if %14 {
      %c0_9 = arith.constant 0 : index
      %c0_10 = arith.constant 0 : index
      %15 = vector.load %arg6[%c0_9, %c0_10] : memref<128x128xf32, #tpu.memory_space<vmem>>, vector<128x128xf32>
      %cst_11 = arith.constant 0.000000e+00 : f32
      %16 = vector.broadcast %cst_11 : f32 to vector<128x128xf32>
      %17 = arith.maximumf %15, %16 : vector<128x128xf32>
      %18 = arith.truncf %17 : vector<128x128xf32> to vector<128x128xbf16>
      %c0_12 = arith.constant 0 : index
      %c0_13 = arith.constant 0 : index
      %19 = vector.load %arg5[%c0_12, %c0_13] : memref<128x128xbf16, #tpu.memory_space<vmem>>, vector<128x128xbf16>
      tpu.vector_store %arg5[%c0_12, %c0_13], %18 {strides = array<i32>} : memref<128x128xbf16, #tpu.memory_space<vmem>>, vector<128x128xbf16>,
    } else {
    }
    return
  }
  func.func @transform_0(%arg0: i32, %arg1: i32) -> (i32, i32) {
    %c0_i32 = arith.constant 0 : i32
    return %arg0, %arg1 : i32, i32
  }
  func.func @transform_1(%arg0: i32, %arg1: i32) -> (i32, i32) {
    %c0_i32 = arith.constant 0 : i32
    %c0_i32_0 = arith.constant 0 : i32
    %c0_i32_1 = arith.constant 0 : i32
    return %c0_i32, %c0_i32_0 : i32, i32
  }
  func.func @transform_2(%arg0: i32, %arg1: i32) -> (i32, i32) {
    %c0_i32 = arith.constant 0 : i32
    %c0_i32_0 = arith.constant 0 : i32
    %c0_i32_1 = arith.constant 0 : i32
    return %c0_i32, %c0_i32_0 : i32, i32
  }
  func.func @transform_3(%arg0: i32, %arg1: i32) -> (i32, i32) {
    %c0_i32 = arith.constant 0 : i32
    %c0_i32_0 = arith.constant 0 : i32
    return %arg0, %c0_i32 : i32, i32
  }
}

module attributes {stable_mosaic.version = 11 : i64} {
  func.func @_gcn_agg_kernel(%arg0: i32, %arg1: i32, %arg2: memref<128x128xbf16, #tpu.memory_space<vmem>>, %arg3: memref<128x128xbf16, #tpu.memory_space<vmem>>, %arg4: memref<1x128xf32, #tpu.memory_space<vmem>>, %arg5: memref<128x128xf32, #tpu.memory_space<vmem>>, %arg6: memref<128x128xf32, #tpu.memory_space<vmem>>) attributes {dimension_semantics = [#tpu.dimension_semantics<parallel>, #tpu.dimension_semantics<arbitrary>], iteration_bounds = array<i64: 1, 1>, scalar_prefetch = 0 : i64, scratch_operands = 1 : i64, tpu.core_type = #tpu.core_type<tc>, window_params = [{transform_indices = @transform_0, window_bounds = array<i64: 128, 128>}, {pipeline_mode = #tpu.pipeline_mode<synchronous>, transform_indices = @transform_1, window_bounds = array<i64: 128, 128>}, {pipeline_mode = #tpu.pipeline_mode<synchronous>, transform_indices = @transform_2, window_bounds = array<i64: 1, 128>}, {transform_indices = @transform_3, window_bounds = array<i64: 128, 128>}]} {
    %c0_i32 = arith.constant 0 : i32
    %0 = arith.cmpi eq, %arg1, %c0_i32 : i32
    %1 = arith.extui %0 : i1 to i32
    %c0_i32_0 = arith.constant 0 : i32
    %2 = arith.cmpi ne, %1, %c0_i32_0 : i32
    scf.if %2 {
      %c0_9 = arith.constant 0 : index
      %c0_10 = arith.constant 0 : index
      %15 = vector.load %arg4[%c0_9, %c0_10] : memref<1x128xf32, #tpu.memory_space<vmem>>, vector<1x128xf32>
      %16 = vector.shape_cast %15 : vector<1x128xf32> to vector<1x128xf32>
      %17 = vector.broadcast %16 : vector<1x128xf32> to vector<128x128xf32>
      %c0_11 = arith.constant 0 : index
      %c0_12 = arith.constant 0 : index
      %18 = vector.load %arg6[%c0_11, %c0_12] : memref<128x128xf32, #tpu.memory_space<vmem>>, vector<128x128xf32>
      tpu.vector_store %arg6[%c0_11, %c0_12], %17 {strides = array<i32>} : memref<128x128xf32, #tpu.memory_space<vmem>>, vector<128x128xf32>,
    } else {
    }
    %c128_i32 = arith.constant 128 : i32
    %3 = arith.muli %arg1, %c128_i32 : i32
    %4 = tpu.assume_multiple %3, 128 : i32
    %5 = arith.index_cast %4 : i32 to index
    %c0 = arith.constant 0 : index
    %6 = vector.load %arg3[%5, %c0] : memref<128x128xbf16, #tpu.memory_space<vmem>>, vector<128x128xbf16>
    %c0_1 = arith.constant 0 : index
    %c0_2 = arith.constant 0 : index
    %7 = vector.load %arg6[%c0_1, %c0_2] : memref<128x128xf32, #tpu.memory_space<vmem>>, vector<128x128xf32>
    %c0_3 = arith.constant 0 : index
    %c0_4 = arith.constant 0 : index
    %8 = vector.load %arg2[%c0_3, %c0_4] : memref<128x128xbf16, #tpu.memory_space<vmem>>, vector<128x128xbf16>
    %cst = arith.constant dense<0.000000e+00> : vector<128x128xf32>
    %9 = tpu.matmul %8, %6, %cst {dimension_numbers = #tpu.dot_dimension_numbers<[1], [0], [0], [1], [0, 0, 1, 1], [], []>} : vector<128x128xbf16>, vector<128x128xbf16>, vector<128x128xf32> -> vector<128x128xf32>
    %10 = arith.addf %7, %9 : vector<128x128xf32>
    %c0_5 = arith.constant 0 : index
    %c0_6 = arith.constant 0 : index
    %11 = vector.load %arg6[%c0_5, %c0_6] : memref<128x128xf32, #tpu.memory_space<vmem>>, vector<128x128xf32>
    tpu.vector_store %arg6[%c0_5, %c0_6], %10 {strides = array<i32>} : memref<128x128xf32, #tpu.memory_space<vmem>>, vector<128x128xf32>,
    %c0_i32_7 = arith.constant 0 : i32
    %12 = arith.cmpi eq, %arg1, %c0_i32_7 : i32
    %13 = arith.extui %12 : i1 to i32
    %c0_i32_8 = arith.constant 0 : i32
    %14 = arith.cmpi ne, %13, %c0_i32_8 : i32
    scf.if %14 {
      %c0_9 = arith.constant 0 : index
      %c0_10 = arith.constant 0 : index
      %15 = vector.load %arg6[%c0_9, %c0_10] : memref<128x128xf32, #tpu.memory_space<vmem>>, vector<128x128xf32>
      %c0_11 = arith.constant 0 : index
      %c0_12 = arith.constant 0 : index
      %16 = vector.load %arg5[%c0_11, %c0_12] : memref<128x128xf32, #tpu.memory_space<vmem>>, vector<128x128xf32>
      tpu.vector_store %arg5[%c0_11, %c0_12], %15 {strides = array<i32>} : memref<128x128xf32, #tpu.memory_space<vmem>>, vector<128x128xf32>,
    } else {
    }
    return
  }
  func.func @transform_0(%arg0: i32, %arg1: i32) -> (i32, i32) {
    %c0_i32 = arith.constant 0 : i32
    return %arg0, %arg1 : i32, i32
  }
  func.func @transform_1(%arg0: i32, %arg1: i32) -> (i32, i32) {
    %c0_i32 = arith.constant 0 : i32
    %c0_i32_0 = arith.constant 0 : i32
    %c0_i32_1 = arith.constant 0 : i32
    return %c0_i32, %c0_i32_0 : i32, i32
  }
  func.func @transform_2(%arg0: i32, %arg1: i32) -> (i32, i32) {
    %c0_i32 = arith.constant 0 : i32
    %c0_i32_0 = arith.constant 0 : i32
    %c0_i32_1 = arith.constant 0 : i32
    return %c0_i32, %c0_i32_0 : i32, i32
  }
  func.func @transform_3(%arg0: i32, %arg1: i32) -> (i32, i32) {
    %c0_i32 = arith.constant 0 : i32
    %c0_i32_0 = arith.constant 0 : i32
    return %arg0, %c0_i32 : i32, i32
  }
}

</mosaic_0001>

<llo_original>
// kernel: gcn_forward.2
$region0: #{gcn_forward.2}
  #allocation0 [shape = 'u32[]', space=smem, size = 0x4, offset = 0x4, fixed_abs, tag = 'smem constant byte address 0x4 - core index']
  #allocation1 [shape = 'u32[144,128]{1,0:T(1,128)}', space=vmem, size = 0x12000, scoped, tag = 'internal scratch']
  #allocation2 [shape = 'f32[128,128]{1,0:T(8,128)}', space=vmem, size = 0x10000, scoped, tag = 'scratch operand']
  %s0 = inlined_call_operand.vmem [shape: bf16[128,128], index: 0, kind: input, shape index: {}]
  %s1 = inlined_call_operand.vmem [shape: bf16[128,128], index: 1, kind: input, shape index: {}]
  %s2 = inlined_call_operand.vmem [shape: f32[1,128], index: 2, kind: input, shape index: {}]
  %s3 = inlined_call_operand.vmem [shape: bf16[128,128], index: 3, kind: output, shape index: {}]
  %s4 = sld [smem:[#allocation0]]
  $region30: #{gcn_forward.2} parent=0
    _
  %s6 = ssub.s32 1, %s4
  %s7 = scalar_select 0, %s6, %s4
  // Predicated region
  $region2: #{gcn_forward.2} parent=0 // pred_check
    _
  $region3: #{gcn_forward.2} parent=0 // pred_check_branch
    %9 = sbr.rel (0) target = $region5
  $region4: #{gcn_forward.2} parent=0 // pred_region
    _
  $region5: #{gcn_forward.2} parent=0 // pred_fallthru
    _
  // Predicated region
  $region6: #{gcn_forward.2} parent=0 // pred_check
    _
  $region7: #{gcn_forward.2} parent=0 // pred_check_branch
    %11 = sbr.rel (0) target = $region9
  $region8: #{gcn_forward.2} parent=0 // pred_region
    _
  $region9: #{gcn_forward.2} parent=0 // pred_fallthru
    _
  // Predicated region
  $region10: #{gcn_forward.2} parent=0 // pred_check
    _
  $region11: #{gcn_forward.2} parent=0 // pred_check_branch
    %13 = sbr.rel (0) target = $region13
  $region12: #{gcn_forward.2} parent=0 // pred_region
    _
  $region13: #{gcn_forward.2} parent=0 // pred_fallthru
    _
  %p15 = scmp.eq.s32.totalorder 0, 0
  // Predicated region
  $region14: #{gcn_forward.2} parent=0 // pred_check
    %p16 = pneg %p15
  $region15: #{gcn_forward.2} parent=0 // pred_check_branch
    %18 = sbr.rel (%p16) target = $region17
  $region16: #{gcn_forward.2} parent=0 // pred_region
    %v19 = vld [vmem:[%s2] sm:$0x1]
    %v21 = vlaneseq
    %v22 = vshrl.u32 %v21, 7
    %v23 = vsub.s32 0, %v22
    %v24 = vrot.slane %v19, %v23
    %26 = vst [vmem:[#allocation2] sm:$0xff] %v24
    %27 = vst [vmem:[#allocation2 + $0x8] sm:$0xff] %v24
    %28 = vst [vmem:[#allocation2 + $0x10] sm:$0xff] %v24
    %29 = vst [vmem:[#allocation2 + $0x18] sm:$0xff] %v24
    %30 = vst [vmem:[#allocation2 + $0x20] sm:$0xff] %v24
    %31 = vst [vmem:[#allocation2 + $0x28] sm:$0xff] %v24
    %32 = vst [vmem:[#allocation2 + $0x30] sm:$0xff] %v24
    %33 = vst [vmem:[#allocation2 + $0x38] sm:$0xff] %v24
    %34 = vst [vmem:[#allocation2 + $0x40] sm:$0xff] %v24
    %35 = vst [vmem:[#allocation2 + $0x48] sm:$0xff] %v24
    %36 = vst [vmem:[#allocation2 + $0x50] sm:$0xff] %v24
    %37 = vst [vmem:[#allocation2 + $0x58] sm:$0xff] %v24
    %38 = vst [vmem:[#allocation2 + $0x60] sm:$0xff] %v24
    %39 = vst [vmem:[#allocation2 + $0x68] sm:$0xff] %v24
    %40 = vst [vmem:[#allocation2 + $0x70] sm:$0xff] %v24
    %41 = vst [vmem:[#allocation2 + $0x78] sm:$0xff] %v24
  $region17: #{gcn_forward.2} parent=0 // pred_fallthru
    _
  %s42 = smul.u32 0, 128
  %s43 = sshra.s32 %s42, 3
  %s44 = sand.u32 %s42, 7
  %s45 = smul.addr %s43, 4
  %s46 = scalar_lea.vmem %s1, %s45
  %v47 = vld [vmem:[%s46] sm:$0xf]
  %v48 = vld [vmem:[%s46 + $0x4] sm:$0xf]
  %v49 = vld [vmem:[%s46 + $0x8] sm:$0xf]
  %v50 = vld [vmem:[%s46 + $0xc] sm:$0xf]
  %v51 = vld [vmem:[%s46 + $0x10] sm:$0xf]
  %v52 = vld [vmem:[%s46 + $0x14] sm:$0xf]
  %v53 = vld [vmem:[%s46 + $0x18] sm:$0xf]
  %v54 = vld [vmem:[%s46 + $0x1c] sm:$0xf]
  %v55 = vld [vmem:[%s46 + $0x20] sm:$0xf]
  %v56 = vld [vmem:[%s46 + $0x24] sm:$0xf]
  %v57 = vld [vmem:[%s46 + $0x28] sm:$0xf]
  %v58 = vld [vmem:[%s46 + $0x2c] sm:$0xf]
  %v59 = vld [vmem:[%s46 + $0x30] sm:$0xf]
  %v60 = vld [vmem:[%s46 + $0x34] sm:$0xf]
  %v61 = vld [vmem:[%s46 + $0x38] sm:$0xf]
  %v62 = vld [vmem:[%s46 + $0x3c] sm:$0xf]
  %v63 = vld [vmem:[#allocation2] sm:$0xff]
  %v64 = vld [vmem:[#allocation2 + $0x8] sm:$0xff]
  %v65 = vld [vmem:[#allocation2 + $0x10] sm:$0xff]
  %v66 = vld [vmem:[#allocation2 + $0x18] sm:$0xff]
  %v67 = vld [vmem:[#allocation2 + $0x20] sm:$0xff]
  %v68 = vld [vmem:[#allocation2 + $0x28] sm:$0xff]
  %v69 = vld [vmem:[#allocation2 + $0x30] sm:$0xff]
  %v70 = vld [vmem:[#allocation2 + $0x38] sm:$0xff]
  %v71 = vld [vmem:[#allocation2 + $0x40] sm:$0xff]
  %v72 = vld [vmem:[#allocation2 + $0x48] sm:$0xff]
  %v73 = vld [vmem:[#allocation2 + $0x50] sm:$0xff]
  %v74 = vld [vmem:[#allocation2 + $0x58] sm:$0xff]
  %v75 = vld [vmem:[#allocation2 + $0x60] sm:$0xff]
  %v76 = vld [vmem:[#allocation2 + $0x68] sm:$0xff]
  %v77 = vld [vmem:[#allocation2 + $0x70] sm:$0xff]
  %v78 = vld [vmem:[#allocation2 + $0x78] sm:$0xff]
  %v79 = vld [vmem:[%s0] sm:$0xf]
  %v80 = vld [vmem:[%s0 + $0x4] sm:$0xf]
  %v81 = vld [vmem:[%s0 + $0x8] sm:$0xf]
  %v82 = vld [vmem:[%s0 + $0xc] sm:$0xf]
  %v83 = vld [vmem:[%s0 + $0x10] sm:$0xf]
  %v84 = vld [vmem:[%s0 + $0x14] sm:$0xf]
  %v85 = vld [vmem:[%s0 + $0x18] sm:$0xf]
  %v86 = vld [vmem:[%s0 + $0x1c] sm:$0xf]
  %v87 = vld [vmem:[%s0 + $0x20] sm:$0xf]
  %v88 = vld [vmem:[%s0 + $0x24] sm:$0xf]
  %v89 = vld [vmem:[%s0 + $0x28] sm:$0xf]
  %v90 = vld [vmem:[%s0 + $0x2c] sm:$0xf]
  %v91 = vld [vmem:[%s0 + $0x30] sm:$0xf]
  %v92 = vld [vmem:[%s0 + $0x34] sm:$0xf]
  %v93 = vld [vmem:[%s0 + $0x38] sm:$0xf]
  %v94 = vld [vmem:[%s0 + $0x3c] sm:$0xf]
  %v111 = vunpack.c.l.b16 %v79
  %v112 = vunpack.c.l.b16 %v80
  %v113 = vunpack.c.l.b16 %v81
  %v114 = vunpack.c.l.b16 %v82
  %v115 = vunpack.c.l.b16 %v83
  %v116 = vunpack.c.l.b16 %v84
  %v117 = vunpack.c.l.b16 %v85
  %v118 = vunpack.c.l.b16 %v86
  %v119 = vunpack.c.l.b16 %v87
  %v120 = vunpack.c.l.b16 %v88
  %v121 = vunpack.c.l.b16 %v89
  %v122 = vunpack.c.l.b16 %v90
  %v123 = vunpack.c.l.b16 %v91
  %v124 = vunpack.c.l.b16 %v92
  %v125 = vunpack.c.l.b16 %v93
  %v126 = vunpack.c.l.b16 %v94
  %v127 = vpack.c.b16 %v112, %v111
  %v128 = vpack.c.b16 %v114, %v113
  %v129 = vpack.c.b16 %v116, %v115
  %v130 = vpack.c.b16 %v118, %v117
  %v131 = vpack.c.b16 %v120, %v119
  %v132 = vpack.c.b16 %v122, %v121
  %v133 = vpack.c.b16 %v124, %v123
  %v134 = vpack.c.b16 %v126, %v125
  %v159 = vunpack.c.l.b16 %v47
  %v160 = vunpack.c.l.b16 %v48
  %v161 = vunpack.c.l.b16 %v49
  %v162 = vunpack.c.l.b16 %v50
  %v163 = vunpack.c.l.b16 %v51
  %v164 = vunpack.c.l.b16 %v52
  %v165 = vunpack.c.l.b16 %v53
  %v166 = vunpack.c.l.b16 %v54
  %v167 = vunpack.c.l.b16 %v55
  %v168 = vunpack.c.l.b16 %v56
  %v169 = vunpack.c.l.b16 %v57
  %v170 = vunpack.c.l.b16 %v58
  %v171 = vunpack.c.l.b16 %v59
  %v172 = vunpack.c.l.b16 %v60
  %v173 = vunpack.c.l.b16 %v61
  %v174 = vunpack.c.l.b16 %v62
  %v175 = vpack.c.b16 %v160, %v159
  %v176 = vpack.c.b16 %v162, %v161
  %v177 = vpack.c.b16 %v164, %v163
  %v178 = vpack.c.b16 %v166, %v165
  %v179 = vpack.c.b16 %v168, %v167
  %v180 = vpack.c.b16 %v170, %v169
  %v181 = vpack.c.b16 %v172, %v171
  %v182 = vpack.c.b16 %v174, %v173
  %191 = vmatprep.subr.bf16.mxu0 0
  %192 = vmatpush1.bf16.msra.mxu0 %v175
  %193 = vmatprep.subr.bf16.mxu0 0
  %194 = vmatpush1.bf16.msra.mxu0 %v176
  %195 = vmatprep.subr.bf16.mxu0 0
  %196 = vmatpush1.bf16.msra.mxu0 %v177
  %197 = vmatprep.subr.bf16.mxu0 0
  %198 = vmatpush1.bf16.msra.mxu0 %v178
  %199 = vmatprep.subr.bf16.mxu0 0
  %200 = vmatpush1.bf16.msra.mxu0 %v179
  %201 = vmatprep.subr.bf16.mxu0 0
  %202 = vmatpush1.bf16.msra.mxu0 %v180
  %203 = vmatprep.subr.bf16.mxu0 0
  %204 = vmatpush1.bf16.msra.mxu0 %v181
  %205 = vmatprep.subr.bf16.mxu0 0
  %206 = vmatpush1.bf16.msra.mxu0 %v182
  %207 = vmatprep.subr.bf16.mxu0 0
  %208 = vmatpush1.bf16.msra.mxu0 0
  %209 = vmatprep.subr.bf16.mxu0 0
  %210 = vmatpush1.bf16.msra.mxu0 0
  %211 = vmatprep.subr.bf16.mxu0 0
  %212 = vmatpush1.bf16.msra.mxu0 0
  %213 = vmatprep.subr.bf16.mxu0 0
  %214 = vmatpush1.bf16.msra.mxu0 0
  %215 = vmatprep.subr.bf16.mxu0 0
  %216 = vmatpush1.bf16.msra.mxu0 0
  %217 = vmatprep.subr.bf16.mxu0 0
  %218 = vmatpush1.bf16.msra.mxu0 0
  %219 = vmatprep.subr.bf16.mxu0 0
  %220 = vmatpush1.bf16.msra.mxu0 0
  %221 = vmatprep.subr.bf16.mxu0 0
  %222 = vmatpush1.bf16.msra.mxu0 0
  %223 = vmatprep.mubr.bf16.mxu0 0
  %224 = vmatmul.mubr.bf16.gmra.mrb[0].mxu0 %v127
  %v225 = vpop.f32.mrb[0].mxu0
  %v226 = vadd.f32 0.0, %v225
  %v227 = vpop.f32.mrb[0].mxu0
  %v228 = vpop.f32.mrb[0].mxu0
  %v229 = vadd.f32 0.0, %v228
  %v230 = vpop.f32.mrb[0].mxu0
  %231 = vmatprep.mubr.bf16.mxu0 0
  %232 = vmatmul.mubr.bf16.gmra.mrb[0].mxu0 %v128
  %v233 = vpop.f32.mrb[0].mxu0
  %v234 = vadd.f32 0.0, %v233
  %v235 = vpop.f32.mrb[0].mxu0
  %v236 = vpop.f32.mrb[0].mxu0
  %v237 = vadd.f32 0.0, %v236
  %v238 = vpop.f32.mrb[0].mxu0
  %239 = vmatprep.mubr.bf16.mxu0 0
  %240 = vmatmul.mubr.bf16.gmra.mrb[0].mxu0 %v129
  %v241 = vpop.f32.mrb[0].mxu0
  %v242 = vadd.f32 0.0, %v241
  %v243 = vpop.f32.mrb[0].mxu0
  %v244 = vpop.f32.mrb[0].mxu0
  %v245 = vadd.f32 0.0, %v244
  %v246 = vpop.f32.mrb[0].mxu0
  %247 = vmatprep.mubr.bf16.mxu0 0
  %248 = vmatmul.mubr.bf16.gmra.mrb[0].mxu0 %v130
  %v249 = vpop.f32.mrb[0].mxu0
  %v250 = vadd.f32 0.0, %v249
  %v251 = vpop.f32.mrb[0].mxu0
  %v252 = vpop.f32.mrb[0].mxu0
  %v253 = vadd.f32 0.0, %v252
  %v254 = vpop.f32.mrb[0].mxu0
  %255 = vmatprep.mubr.bf16.mxu0 0
  %256 = vmatmul.mubr.bf16.gmra.mrb[0].mxu0 %v131
  %v257 = vpop.f32.mrb[0].mxu0
  %v258 = vadd.f32 0.0, %v257
  %v259 = vpop.f32.mrb[0].mxu0
  %v260 = vpop.f32.mrb[0].mxu0
  %v261 = vadd.f32 0.0, %v260
  %v262 = vpop.f32.mrb[0].mxu0
  %263 = vmatprep.mubr.bf16.mxu0 0
  %264 = vmatmul.mubr.bf16.gmra.mrb[0].mxu0 %v132
  %v265 = vpop.f32.mrb[0].mxu0
  %v266 = vadd.f32 0.0, %v265
  %v267 = vpop.f32.mrb[0].mxu0
  %v268 = vpop.f32.mrb[0].mxu0
  %v269 = vadd.f32 0.0, %v268
  %v270 = vpop.f32.mrb[0].mxu0
  %271 = vmatprep.mubr.bf16.mxu0 0
  %272 = vmatmul.mubr.bf16.gmra.mrb[0].mxu0 %v133
  %v273 = vpop.f32.mrb[0].mxu0
  %v274 = vadd.f32 0.0, %v273
  %v275 = vpop.f32.mrb[0].mxu0
  %v276 = vpop.f32.mrb[0].mxu0
  %v277 = vadd.f32 0.0, %v276
  %v278 = vpop.f32.mrb[0].mxu0
  %279 = vmatprep.mubr.bf16.mxu0 0
  %280 = vmatmul.mubr.bf16.gmra.mrb[0].mxu0 %v134
  %v281 = vpop.f32.mrb[0].mxu0
  %v282 = vadd.f32 0.0, %v281
  %v283 = vpop.f32.mrb[0].mxu0
  %v284 = vpop.f32.mrb[0].mxu0
  %v285 = vadd.f32 0.0, %v284
  %v286 = vpop.f32.mrb[0].mxu0
  %287 = vdwg.mxu0
  %v288 = vadd.f32 %v63, %v226
  %v289 = vadd.f32 %v64, %v229
  %v290 = vadd.f32 %v65, %v234
  %v291 = vadd.f32 %v66, %v237
  %v292 = vadd.f32 %v67, %v242
  %v293 = vadd.f32 %v68, %v245
  %v294 = vadd.f32 %v69, %v250
  %v295 = vadd.f32 %v70, %v253
  %v296 = vadd.f32 %v71, %v258
  %v297 = vadd.f32 %v72, %v261
  %v298 = vadd.f32 %v73, %v266
  %v299 = vadd.f32 %v74, %v269
  %v300 = vadd.f32 %v75, %v274
  %v301 = vadd.f32 %v76, %v277
  %v302 = vadd.f32 %v77, %v282
  %v303 = vadd.f32 %v78, %v285
  %304 = vst [vmem:[#allocation2] sm:$0xff] %v288
  %305 = vst [vmem:[#allocation2 + $0x8] sm:$0xff] %v289
  %306 = vst [vmem:[#allocation2 + $0x10] sm:$0xff] %v290
  %307 = vst [vmem:[#allocation2 + $0x18] sm:$0xff] %v291
  %308 = vst [vmem:[#allocation2 + $0x20] sm:$0xff] %v292
  %309 = vst [vmem:[#allocation2 + $0x28] sm:$0xff] %v293
  %310 = vst [vmem:[#allocation2 + $0x30] sm:$0xff] %v294
  %311 = vst [vmem:[#allocation2 + $0x38] sm:$0xff] %v295
  %312 = vst [vmem:[#allocation2 + $0x40] sm:$0xff] %v296
  %313 = vst [vmem:[#allocation2 + $0x48] sm:$0xff] %v297
  %314 = vst [vmem:[#allocation2 + $0x50] sm:$0xff] %v298
  %315 = vst [vmem:[#allocation2 + $0x58] sm:$0xff] %v299
  %316 = vst [vmem:[#allocation2 + $0x60] sm:$0xff] %v300
  %317 = vst [vmem:[#allocation2 + $0x68] sm:$0xff] %v301
  %318 = vst [vmem:[#allocation2 + $0x70] sm:$0xff] %v302
  %319 = vst [vmem:[#allocation2 + $0x78] sm:$0xff] %v303
  // Predicated region
  $region18: #{gcn_forward.2} parent=0 // pred_check
    %p320 = pneg %p15
  $region19: #{gcn_forward.2} parent=0 // pred_check_branch
    %322 = sbr.rel (%p320) target = $region21
  $region20: #{gcn_forward.2} parent=0 // pred_region
    %v323 = vld [vmem:[#allocation2] sm:$0xff]
    %v324 = vld [vmem:[#allocation2 + $0x8] sm:$0xff]
    %v325 = vld [vmem:[#allocation2 + $0x10] sm:$0xff]
    %v326 = vld [vmem:[#allocation2 + $0x18] sm:$0xff]
    %v327 = vld [vmem:[#allocation2 + $0x20] sm:$0xff]
    %v328 = vld [vmem:[#allocation2 + $0x28] sm:$0xff]
    %v329 = vld [vmem:[#allocation2 + $0x30] sm:$0xff]
    %v330 = vld [vmem:[#allocation2 + $0x38] sm:$0xff]
    %v331 = vld [vmem:[#allocation2 + $0x40] sm:$0xff]
    %v332 = vld [vmem:[#allocation2 + $0x48] sm:$0xff]
    %v333 = vld [vmem:[#allocation2 + $0x50] sm:$0xff]
    %v334 = vld [vmem:[#allocation2 + $0x58] sm:$0xff]
    %v335 = vld [vmem:[#allocation2 + $0x60] sm:$0xff]
    %v336 = vld [vmem:[#allocation2 + $0x68] sm:$0xff]
    %v337 = vld [vmem:[#allocation2 + $0x70] sm:$0xff]
    %v338 = vld [vmem:[#allocation2 + $0x78] sm:$0xff]
    %v339 = vmax.f32 %v323, 0.0
    %v340 = vmax.f32 %v324, 0.0
    %v341 = vmax.f32 %v325, 0.0
    %v342 = vmax.f32 %v326, 0.0
    %v343 = vmax.f32 %v327, 0.0
    %v344 = vmax.f32 %v328, 0.0
    %v345 = vmax.f32 %v329, 0.0
    %v346 = vmax.f32 %v330, 0.0
    %v347 = vmax.f32 %v331, 0.0
    %v348 = vmax.f32 %v332, 0.0
    %v349 = vmax.f32 %v333, 0.0
    %v350 = vmax.f32 %v334, 0.0
    %v351 = vmax.f32 %v335, 0.0
    %v352 = vmax.f32 %v336, 0.0
    %v353 = vmax.f32 %v337, 0.0
    %v354 = vmax.f32 %v338, 0.0
    %v355 = vpack.c.bf16 %v340, %v339
    %v356 = vpack.c.bf16 %v342, %v341
    %v357 = vpack.c.bf16 %v344, %v343
    %v358 = vpack.c.bf16 %v346, %v345
    %v359 = vpack.c.bf16 %v348, %v347
    %v360 = vpack.c.bf16 %v350, %v349
    %v361 = vpack.c.bf16 %v352, %v351
    %v362 = vpack.c.bf16 %v354, %v353
    %363 = vst [vmem:[%s3] sm:$0xff] %v355
    %364 = vst [vmem:[%s3 + $0x8] sm:$0xff] %v356
    %365 = vst [vmem:[%s3 + $0x10] sm:$0xff] %v357
    %366 = vst [vmem:[%s3 + $0x18] sm:$0xff] %v358
    %367 = vst [vmem:[%s3 + $0x20] sm:$0xff] %v359
    %368 = vst [vmem:[%s3 + $0x28] sm:$0xff] %v360
    %369 = vst [vmem:[%s3 + $0x30] sm:$0xff] %v361
    %370 = vst [vmem:[%s3 + $0x38] sm:$0xff] %v362
  $region21: #{gcn_forward.2} parent=0 // pred_fallthru
    _
  // Predicated region
  $region22: #{gcn_forward.2} parent=0 // pred_check
    _
  $region23: #{gcn_forward.2} parent=0 // pred_check_branch
    %372 = sbr.rel (0) target = $region25
  $region24: #{gcn_forward.2} parent=0 // pred_region
    _
  $region25: #{gcn_forward.2} parent=0 // pred_fallthru
    _
  // Predicated region
  $region26: #{gcn_forward.2} parent=0 // pred_check
    _
  $region27: #{gcn_forward.2} parent=0 // pred_check_branch
    %374 = sbr.rel (0) target = $region29
  $region28: #{gcn_forward.2} parent=0 // pred_region
    _
  $region29: #{gcn_forward.2} parent=0 // pred_fallthru
    _

// kernel: gcn_forward.3
$region0: #{gcn_forward.3}
  #allocation0 [shape = 'u32[]', space=smem, size = 0x4, offset = 0x4, fixed_abs, tag = 'smem constant byte address 0x4 - core index']
  #allocation1 [shape = 'u32[144,128]{1,0:T(1,128)}', space=vmem, size = 0x12000, scoped, tag = 'internal scratch']
  #allocation2 [shape = 'f32[128,128]{1,0:T(8,128)}', space=vmem, size = 0x10000, scoped, tag = 'scratch operand']
  %s0 = inlined_call_operand.vmem [shape: bf16[128,128], index: 0, kind: input, shape index: {}]
  %s1 = inlined_call_operand.vmem [shape: bf16[128,128], index: 1, kind: input, shape index: {}]
  %s2 = inlined_call_operand.vmem [shape: f32[1,128], index: 2, kind: input, shape index: {}]
  %s3 = inlined_call_operand.vmem [shape: f32[128,128], index: 3, kind: output, shape index: {}]
  %s4 = sld [smem:[#allocation0]]
  $region30: #{gcn_forward.3} parent=0
    _
  %s6 = ssub.s32 1, %s4
  %s7 = scalar_select 0, %s6, %s4
  // Predicated region
  $region2: #{gcn_forward.3} parent=0 // pred_check
    _
  $region3: #{gcn_forward.3} parent=0 // pred_check_branch
    %9 = sbr.rel (0) target = $region5
  $region4: #{gcn_forward.3} parent=0 // pred_region
    _
  $region5: #{gcn_forward.3} parent=0 // pred_fallthru
    _
  // Predicated region
  $region6: #{gcn_forward.3} parent=0 // pred_check
    _
  $region7: #{gcn_forward.3} parent=0 // pred_check_branch
    %11 = sbr.rel (0) target = $region9
  $region8: #{gcn_forward.3} parent=0 // pred_region
    _
  $region9: #{gcn_forward.3} parent=0 // pred_fallthru
    _
  // Predicated region
  $region10: #{gcn_forward.3} parent=0 // pred_check
    _
  $region11: #{gcn_forward.3} parent=0 // pred_check_branch
    %13 = sbr.rel (0) target = $region13
  $region12: #{gcn_forward.3} parent=0 // pred_region
    _
  $region13: #{gcn_forward.3} parent=0 // pred_fallthru
    _
  %p15 = scmp.eq.s32.totalorder 0, 0
  // Predicated region
  $region14: #{gcn_forward.3} parent=0 // pred_check
    %p16 = pneg %p15
  $region15: #{gcn_forward.3} parent=0 // pred_check_branch
    %18 = sbr.rel (%p16) target = $region17
  $region16: #{gcn_forward.3} parent=0 // pred_region
    %v19 = vld [vmem:[%s2] sm:$0x1]
    %v21 = vlaneseq
    %v22 = vshrl.u32 %v21, 7
    %v23 = vsub.s32 0, %v22
    %v24 = vrot.slane %v19, %v23
    %26 = vst [vmem:[#allocation2] sm:$0xff] %v24
    %27 = vst [vmem:[#allocation2 + $0x8] sm:$0xff] %v24
    %28 = vst [vmem:[#allocation2 + $0x10] sm:$0xff] %v24
    %29 = vst [vmem:[#allocation2 + $0x18] sm:$0xff] %v24
    %30 = vst [vmem:[#allocation2 + $0x20] sm:$0xff] %v24
    %31 = vst [vmem:[#allocation2 + $0x28] sm:$0xff] %v24
    %32 = vst [vmem:[#allocation2 + $0x30] sm:$0xff] %v24
    %33 = vst [vmem:[#allocation2 + $0x38] sm:$0xff] %v24
    %34 = vst [vmem:[#allocation2 + $0x40] sm:$0xff] %v24
    %35 = vst [vmem:[#allocation2 + $0x48] sm:$0xff] %v24
    %36 = vst [vmem:[#allocation2 + $0x50] sm:$0xff] %v24
    %37 = vst [vmem:[#allocation2 + $0x58] sm:$0xff] %v24
    %38 = vst [vmem:[#allocation2 + $0x60] sm:$0xff] %v24
    %39 = vst [vmem:[#allocation2 + $0x68] sm:$0xff] %v24
    %40 = vst [vmem:[#allocation2 + $0x70] sm:$0xff] %v24
    %41 = vst [vmem:[#allocation2 + $0x78] sm:$0xff] %v24
  $region17: #{gcn_forward.3} parent=0 // pred_fallthru
    _
  %s42 = smul.u32 0, 128
  %s43 = sshra.s32 %s42, 3
  %s44 = sand.u32 %s42, 7
  %s45 = smul.addr %s43, 4
  %s46 = scalar_lea.vmem %s1, %s45
  %v47 = vld [vmem:[%s46] sm:$0xf]
  %v48 = vld [vmem:[%s46 + $0x4] sm:$0xf]
  %v49 = vld [vmem:[%s46 + $0x8] sm:$0xf]
  %v50 = vld [vmem:[%s46 + $0xc] sm:$0xf]
  %v51 = vld [vmem:[%s46 + $0x10] sm:$0xf]
  %v52 = vld [vmem:[%s46 + $0x14] sm:$0xf]
  %v53 = vld [vmem:[%s46 + $0x18] sm:$0xf]
  %v54 = vld [vmem:[%s46 + $0x1c] sm:$0xf]
  %v55 = vld [vmem:[%s46 + $0x20] sm:$0xf]
  %v56 = vld [vmem:[%s46 + $0x24] sm:$0xf]
  %v57 = vld [vmem:[%s46 + $0x28] sm:$0xf]
  %v58 = vld [vmem:[%s46 + $0x2c] sm:$0xf]
  %v59 = vld [vmem:[%s46 + $0x30] sm:$0xf]
  %v60 = vld [vmem:[%s46 + $0x34] sm:$0xf]
  %v61 = vld [vmem:[%s46 + $0x38] sm:$0xf]
  %v62 = vld [vmem:[%s46 + $0x3c] sm:$0xf]
  %v63 = vld [vmem:[#allocation2] sm:$0xff]
  %v64 = vld [vmem:[#allocation2 + $0x8] sm:$0xff]
  %v65 = vld [vmem:[#allocation2 + $0x10] sm:$0xff]
  %v66 = vld [vmem:[#allocation2 + $0x18] sm:$0xff]
  %v67 = vld [vmem:[#allocation2 + $0x20] sm:$0xff]
  %v68 = vld [vmem:[#allocation2 + $0x28] sm:$0xff]
  %v69 = vld [vmem:[#allocation2 + $0x30] sm:$0xff]
  %v70 = vld [vmem:[#allocation2 + $0x38] sm:$0xff]
  %v71 = vld [vmem:[#allocation2 + $0x40] sm:$0xff]
  %v72 = vld [vmem:[#allocation2 + $0x48] sm:$0xff]
  %v73 = vld [vmem:[#allocation2 + $0x50] sm:$0xff]
  %v74 = vld [vmem:[#allocation2 + $0x58] sm:$0xff]
  %v75 = vld [vmem:[#allocation2 + $0x60] sm:$0xff]
  %v76 = vld [vmem:[#allocation2 + $0x68] sm:$0xff]
  %v77 = vld [vmem:[#allocation2 + $0x70] sm:$0xff]
  %v78 = vld [vmem:[#allocation2 + $0x78] sm:$0xff]
  %v79 = vld [vmem:[%s0] sm:$0xf]
  %v80 = vld [vmem:[%s0 + $0x4] sm:$0xf]
  %v81 = vld [vmem:[%s0 + $0x8] sm:$0xf]
  %v82 = vld [vmem:[%s0 + $0xc] sm:$0xf]
  %v83 = vld [vmem:[%s0 + $0x10] sm:$0xf]
  %v84 = vld [vmem:[%s0 + $0x14] sm:$0xf]
  %v85 = vld [vmem:[%s0 + $0x18] sm:$0xf]
  %v86 = vld [vmem:[%s0 + $0x1c] sm:$0xf]
  %v87 = vld [vmem:[%s0 + $0x20] sm:$0xf]
  %v88 = vld [vmem:[%s0 + $0x24] sm:$0xf]
  %v89 = vld [vmem:[%s0 + $0x28] sm:$0xf]
  %v90 = vld [vmem:[%s0 + $0x2c] sm:$0xf]
  %v91 = vld [vmem:[%s0 + $0x30] sm:$0xf]
  %v92 = vld [vmem:[%s0 + $0x34] sm:$0xf]
  %v93 = vld [vmem:[%s0 + $0x38] sm:$0xf]
  %v94 = vld [vmem:[%s0 + $0x3c] sm:$0xf]
  %v111 = vunpack.c.l.b16 %v79
  %v112 = vunpack.c.l.b16 %v80
  %v113 = vunpack.c.l.b16 %v81
  %v114 = vunpack.c.l.b16 %v82
  %v115 = vunpack.c.l.b16 %v83
  %v116 = vunpack.c.l.b16 %v84
  %v117 = vunpack.c.l.b16 %v85
  %v118 = vunpack.c.l.b16 %v86
  %v119 = vunpack.c.l.b16 %v87
  %v120 = vunpack.c.l.b16 %v88
  %v121 = vunpack.c.l.b16 %v89
  %v122 = vunpack.c.l.b16 %v90
  %v123 = vunpack.c.l.b16 %v91
  %v124 = vunpack.c.l.b16 %v92
  %v125 = vunpack.c.l.b16 %v93
  %v126 = vunpack.c.l.b16 %v94
  %v127 = vpack.c.b16 %v112, %v111
  %v128 = vpack.c.b16 %v114, %v113
  %v129 = vpack.c.b16 %v116, %v115
  %v130 = vpack.c.b16 %v118, %v117
  %v131 = vpack.c.b16 %v120, %v119
  %v132 = vpack.c.b16 %v122, %v121
  %v133 = vpack.c.b16 %v124, %v123
  %v134 = vpack.c.b16 %v126, %v125
  %v159 = vunpack.c.l.b16 %v47
  %v160 = vunpack.c.l.b16 %v48
  %v161 = vunpack.c.l.b16 %v49
  %v162 = vunpack.c.l.b16 %v50
  %v163 = vunpack.c.l.b16 %v51
  %v164 = vunpack.c.l.b16 %v52
  %v165 = vunpack.c.l.b16 %v53
  %v166 = vunpack.c.l.b16 %v54
  %v167 = vunpack.c.l.b16 %v55
  %v168 = vunpack.c.l.b16 %v56
  %v169 = vunpack.c.l.b16 %v57
  %v170 = vunpack.c.l.b16 %v58
  %v171 = vunpack.c.l.b16 %v59
  %v172 = vunpack.c.l.b16 %v60
  %v173 = vunpack.c.l.b16 %v61
  %v174 = vunpack.c.l.b16 %v62
  %v175 = vpack.c.b16 %v160, %v159
  %v176 = vpack.c.b16 %v162, %v161
  %v177 = vpack.c.b16 %v164, %v163
  %v178 = vpack.c.b16 %v166, %v165
  %v179 = vpack.c.b16 %v168, %v167
  %v180 = vpack.c.b16 %v170, %v169
  %v181 = vpack.c.b16 %v172, %v171
  %v182 = vpack.c.b16 %v174, %v173
  %191 = vmatprep.subr.bf16.mxu0 0
  %192 = vmatpush1.bf16.msra.mxu0 %v175
  %193 = vmatprep.subr.bf16.mxu0 0
  %194 = vmatpush1.bf16.msra.mxu0 %v176
  %195 = vmatprep.subr.bf16.mxu0 0
  %196 = vmatpush1.bf16.msra.mxu0 %v177
  %197 = vmatprep.subr.bf16.mxu0 0
  %198 = vmatpush1.bf16.msra.mxu0 %v178
  %199 = vmatprep.subr.bf16.mxu0 0
  %200 = vmatpush1.bf16.msra.mxu0 %v179
  %201 = vmatprep.subr.bf16.mxu0 0
  %202 = vmatpush1.bf16.msra.mxu0 %v180
  %203 = vmatprep.subr.bf16.mxu0 0
  %204 = vmatpush1.bf16.msra.mxu0 %v181
  %205 = vmatprep.subr.bf16.mxu0 0
  %206 = vmatpush1.bf16.msra.mxu0 %v182
  %207 = vmatprep.subr.bf16.mxu0 0
  %208 = vmatpush1.bf16.msra.mxu0 0
  %209 = vmatprep.subr.bf16.mxu0 0
  %210 = vmatpush1.bf16.msra.mxu0 0
  %211 = vmatprep.subr.bf16.mxu0 0
  %212 = vmatpush1.bf16.msra.mxu0 0
  %213 = vmatprep.subr.bf16.mxu0 0
  %214 = vmatpush1.bf16.msra.mxu0 0
  %215 = vmatprep.subr.bf16.mxu0 0
  %216 = vmatpush1.bf16.msra.mxu0 0
  %217 = vmatprep.subr.bf16.mxu0 0
  %218 = vmatpush1.bf16.msra.mxu0 0
  %219 = vmatprep.subr.bf16.mxu0 0
  %220 = vmatpush1.bf16.msra.mxu0 0
  %221 = vmatprep.subr.bf16.mxu0 0
  %222 = vmatpush1.bf16.msra.mxu0 0
  %223 = vmatprep.mubr.bf16.mxu0 0
  %224 = vmatmul.mubr.bf16.gmra.mrb[0].mxu0 %v127
  %v225 = vpop.f32.mrb[0].mxu0
  %v226 = vadd.f32 0.0, %v225
  %v227 = vpop.f32.mrb[0].mxu0
  %v228 = vpop.f32.mrb[0].mxu0
  %v229 = vadd.f32 0.0, %v228
  %v230 = vpop.f32.mrb[0].mxu0
  %231 = vmatprep.mubr.bf16.mxu0 0
  %232 = vmatmul.mubr.bf16.gmra.mrb[0].mxu0 %v128
  %v233 = vpop.f32.mrb[0].mxu0
  %v234 = vadd.f32 0.0, %v233
  %v235 = vpop.f32.mrb[0].mxu0
  %v236 = vpop.f32.mrb[0].mxu0
  %v237 = vadd.f32 0.0, %v236
  %v238 = vpop.f32.mrb[0].mxu0
  %239 = vmatprep.mubr.bf16.mxu0 0
  %240 = vmatmul.mubr.bf16.gmra.mrb[0].mxu0 %v129
  %v241 = vpop.f32.mrb[0].mxu0
  %v242 = vadd.f32 0.0, %v241
  %v243 = vpop.f32.mrb[0].mxu0
  %v244 = vpop.f32.mrb[0].mxu0
  %v245 = vadd.f32 0.0, %v244
  %v246 = vpop.f32.mrb[0].mxu0
  %247 = vmatprep.mubr.bf16.mxu0 0
  %248 = vmatmul.mubr.bf16.gmra.mrb[0].mxu0 %v130
  %v249 = vpop.f32.mrb[0].mxu0
  %v250 = vadd.f32 0.0, %v249
  %v251 = vpop.f32.mrb[0].mxu0
  %v252 = vpop.f32.mrb[0].mxu0
  %v253 = vadd.f32 0.0, %v252
  %v254 = vpop.f32.mrb[0].mxu0
  %255 = vmatprep.mubr.bf16.mxu0 0
  %256 = vmatmul.mubr.bf16.gmra.mrb[0].mxu0 %v131
  %v257 = vpop.f32.mrb[0].mxu0
  %v258 = vadd.f32 0.0, %v257
  %v259 = vpop.f32.mrb[0].mxu0
  %v260 = vpop.f32.mrb[0].mxu0
  %v261 = vadd.f32 0.0, %v260
  %v262 = vpop.f32.mrb[0].mxu0
  %263 = vmatprep.mubr.bf16.mxu0 0
  %264 = vmatmul.mubr.bf16.gmra.mrb[0].mxu0 %v132
  %v265 = vpop.f32.mrb[0].mxu0
  %v266 = vadd.f32 0.0, %v265
  %v267 = vpop.f32.mrb[0].mxu0
  %v268 = vpop.f32.mrb[0].mxu0
  %v269 = vadd.f32 0.0, %v268
  %v270 = vpop.f32.mrb[0].mxu0
  %271 = vmatprep.mubr.bf16.mxu0 0
  %272 = vmatmul.mubr.bf16.gmra.mrb[0].mxu0 %v133
  %v273 = vpop.f32.mrb[0].mxu0
  %v274 = vadd.f32 0.0, %v273
  %v275 = vpop.f32.mrb[0].mxu0
  %v276 = vpop.f32.mrb[0].mxu0
  %v277 = vadd.f32 0.0, %v276
  %v278 = vpop.f32.mrb[0].mxu0
  %279 = vmatprep.mubr.bf16.mxu0 0
  %280 = vmatmul.mubr.bf16.gmra.mrb[0].mxu0 %v134
  %v281 = vpop.f32.mrb[0].mxu0
  %v282 = vadd.f32 0.0, %v281
  %v283 = vpop.f32.mrb[0].mxu0
  %v284 = vpop.f32.mrb[0].mxu0
  %v285 = vadd.f32 0.0, %v284
  %v286 = vpop.f32.mrb[0].mxu0
  %287 = vdwg.mxu0
  %v288 = vadd.f32 %v63, %v226
  %v289 = vadd.f32 %v64, %v229
  %v290 = vadd.f32 %v65, %v234
  %v291 = vadd.f32 %v66, %v237
  %v292 = vadd.f32 %v67, %v242
  %v293 = vadd.f32 %v68, %v245
  %v294 = vadd.f32 %v69, %v250
  %v295 = vadd.f32 %v70, %v253
  %v296 = vadd.f32 %v71, %v258
  %v297 = vadd.f32 %v72, %v261
  %v298 = vadd.f32 %v73, %v266
  %v299 = vadd.f32 %v74, %v269
  %v300 = vadd.f32 %v75, %v274
  %v301 = vadd.f32 %v76, %v277
  %v302 = vadd.f32 %v77, %v282
  %v303 = vadd.f32 %v78, %v285
  %304 = vst [vmem:[#allocation2] sm:$0xff] %v288
  %305 = vst [vmem:[#allocation2 + $0x8] sm:$0xff] %v289
  %306 = vst [vmem:[#allocation2 + $0x10] sm:$0xff] %v290
  %307 = vst [vmem:[#allocation2 + $0x18] sm:$0xff] %v291
  %308 = vst [vmem:[#allocation2 + $0x20] sm:$0xff] %v292
  %309 = vst [vmem:[#allocation2 + $0x28] sm:$0xff] %v293
  %310 = vst [vmem:[#allocation2 + $0x30] sm:$0xff] %v294
  %311 = vst [vmem:[#allocation2 + $0x38] sm:$0xff] %v295
  %312 = vst [vmem:[#allocation2 + $0x40] sm:$0xff] %v296
  %313 = vst [vmem:[#allocation2 + $0x48] sm:$0xff] %v297
  %314 = vst [vmem:[#allocation2 + $0x50] sm:$0xff] %v298
  %315 = vst [vmem:[#allocation2 + $0x58] sm:$0xff] %v299
  %316 = vst [vmem:[#allocation2 + $0x60] sm:$0xff] %v300
  %317 = vst [vmem:[#allocation2 + $0x68] sm:$0xff] %v301
  %318 = vst [vmem:[#allocation2 + $0x70] sm:$0xff] %v302
  %319 = vst [vmem:[#allocation2 + $0x78] sm:$0xff] %v303
  // Predicated region
  $region18: #{gcn_forward.3} parent=0 // pred_check
    %p320 = pneg %p15
  $region19: #{gcn_forward.3} parent=0 // pred_check_branch
    %322 = sbr.rel (%p320) target = $region21
  $region20: #{gcn_forward.3} parent=0 // pred_region
    %v323 = vld [vmem:[#allocation2] sm:$0xff]
    %v324 = vld [vmem:[#allocation2 + $0x8] sm:$0xff]
    %v325 = vld [vmem:[#allocation2 + $0x10] sm:$0xff]
    %v326 = vld [vmem:[#allocation2 + $0x18] sm:$0xff]
    %v327 = vld [vmem:[#allocation2 + $0x20] sm:$0xff]
    %v328 = vld [vmem:[#allocation2 + $0x28] sm:$0xff]
    %v329 = vld [vmem:[#allocation2 + $0x30] sm:$0xff]
    %v330 = vld [vmem:[#allocation2 + $0x38] sm:$0xff]
    %v331 = vld [vmem:[#allocation2 + $0x40] sm:$0xff]
    %v332 = vld [vmem:[#allocation2 + $0x48] sm:$0xff]
    %v333 = vld [vmem:[#allocation2 + $0x50] sm:$0xff]
    %v334 = vld [vmem:[#allocation2 + $0x58] sm:$0xff]
    %v335 = vld [vmem:[#allocation2 + $0x60] sm:$0xff]
    %v336 = vld [vmem:[#allocation2 + $0x68] sm:$0xff]
    %v337 = vld [vmem:[#allocation2 + $0x70] sm:$0xff]
    %v338 = vld [vmem:[#allocation2 + $0x78] sm:$0xff]
    %339 = vst [vmem:[%s3] sm:$0xff] %v323
    %340 = vst [vmem:[%s3 + $0x8] sm:$0xff] %v324
    %341 = vst [vmem:[%s3 + $0x10] sm:$0xff] %v325
    %342 = vst [vmem:[%s3 + $0x18] sm:$0xff] %v326
    %343 = vst [vmem:[%s3 + $0x20] sm:$0xff] %v327
    %344 = vst [vmem:[%s3 + $0x28] sm:$0xff] %v328
    %345 = vst [vmem:[%s3 + $0x30] sm:$0xff] %v329
    %346 = vst [vmem:[%s3 + $0x38] sm:$0xff] %v330
    %347 = vst [vmem:[%s3 + $0x40] sm:$0xff] %v331
    %348 = vst [vmem:[%s3 + $0x48] sm:$0xff] %v332
    %349 = vst [vmem:[%s3 + $0x50] sm:$0xff] %v333
    %350 = vst [vmem:[%s3 + $0x58] sm:$0xff] %v334
    %351 = vst [vmem:[%s3 + $0x60] sm:$0xff] %v335
    %352 = vst [vmem:[%s3 + $0x68] sm:$0xff] %v336
    %353 = vst [vmem:[%s3 + $0x70] sm:$0xff] %v337
    %354 = vst [vmem:[%s3 + $0x78] sm:$0xff] %v338
  $region21: #{gcn_forward.3} parent=0 // pred_fallthru
    _
  // Predicated region
  $region22: #{gcn_forward.3} parent=0 // pred_check
    _
  $region23: #{gcn_forward.3} parent=0 // pred_check_branch
    %356 = sbr.rel (0) target = $region25
  $region24: #{gcn_forward.3} parent=0 // pred_region
    _
  $region25: #{gcn_forward.3} parent=0 // pred_fallthru
    _
  // Predicated region
  $region26: #{gcn_forward.3} parent=0 // pred_check
    _
  $region27: #{gcn_forward.3} parent=0 // pred_check_branch
    %358 = sbr.rel (0) target = $region29
  $region28: #{gcn_forward.3} parent=0 // pred_region
    _
  $region29: #{gcn_forward.3} parent=0 // pred_fallthru
    _

</llo_original>
